<compile_context>
chip_gen: v5e
topology: v5e:2x2
jax: 0.10.0
libtpu: 0.0.40
codegen_flags: <defaults>
</compile_context>

<pallas_src>
import math

import jax
import jax.numpy as jnp
from jax.experimental import pallas as pl
from jax.experimental.pallas import tpu as pltpu

LANE = 128  # TPU lane width; hidden dim is padded to a multiple of this.


# ----------------------------------------------------------------------------
# Pallas kernel: one batch tile per grid step.
# ----------------------------------------------------------------------------
def _local_attention_kernel(feat_ref, wqkv_ref, bqkv_ref, saT_ref, out_ref):
    bt, s, hp = feat_ref.shape

    # (Bt, S, Hp) -> (Bt*S, Hp): leading-dim merge, layout-preserving
    # (S % 8 == 0, Hp % 128 == 0).  feat_ref is already bf16.
    x2d = feat_ref[...].reshape(bt * s, hp)

    # Fused Q/K/V projection: one (Bt*S, Hp) @ (Hp, 3Hp) MXU matmul, f32
    # accumulate, f32 bias add.  1/sqrt(d_k) is folded into the Q block.
    qkv = jnp.dot(x2d, wqkv_ref[...],
                  preferred_element_type=jnp.float32) + bqkv_ref[...]
    # 128-lane-aligned slices -> no cross-lane shuffles.
    q = qkv[:, 0 * hp:1 * hp].reshape(bt, s, hp).astype(jnp.bfloat16)
    k = qkv[:, 1 * hp:2 * hp].reshape(bt, s, hp).astype(jnp.bfloat16)
    v = qkv[:, 2 * hp:3 * hp].reshape(bt, s, hp).astype(jnp.bfloat16)

    # scores = (Q/sqrt(d)) K^T Sa^T   ( ==  Q (Sa K)^T / sqrt(d) ), transpose-free.
    qk = jnp.einsum('bih,bjh->bij', q, k,
                    preferred_element_type=jnp.float32)            # (Bt, S, S)
    scores = jnp.dot(qk.reshape(bt * s, s).astype(jnp.bfloat16), saT_ref[...],
                     preferred_element_type=jnp.float32)           # (Bt*S, S)

    # Numerically stable softmax with DEFERRED normalization: normalize the
    # small (Bt,S,Hp) result of e @ V instead of the (Bt*S,S) attn matrix.
    scores = scores - jnp.max(scores, axis=-1, keepdims=True)
    e = jnp.exp(scores)                                            # f32
    denom = jnp.sum(e, axis=-1, keepdims=True).reshape(bt, s, 1)   # (Bt, S, 1)

    out_unnorm = jnp.einsum('bij,bjh->bih',
                            e.reshape(bt, s, s).astype(jnp.bfloat16), v,
                            preferred_element_type=jnp.float32)    # (Bt, S, Hp)
    # approx reciprocal -> EUP slot (otherwise idle).
    out_ref[...] = out_unnorm * pl.reciprocal(denom, approx=True)


# ----------------------------------------------------------------------------
# Wrapper: padding, tiling, BlockSpecs.
# ----------------------------------------------------------------------------
def _default_batch_tile(B, S, Hp, budget_bytes=40 * 2**20):
    """Largest bt that divides B, gives >= min(B, 4) grid steps, and keeps the
    rough per-step VMEM footprint under budget (v7x has only 64 MiB physical)."""
    def footprint(bt):
        qkv = bt * S * 3 * Hp * 4                    # f32 qkv intermediate
        sco = 3 * bt * S * S * 4                     # qk / scores / e (f32)
        io = 2 * bt * S * Hp * (2 + 4)               # double-buffered bf16 in + f32 out
        consts = Hp * 3 * Hp * 2 + S * S * 2 + 3 * Hp * 4
        return qkv + sco + io + consts

    target_steps = min(B, 4)
    bt = max(1, B // target_steps)
    while bt > 1 and (B % bt != 0 or footprint(bt) > budget_bytes):
        bt -= 1
    return bt


def local_attention_pallas(feature_padded, w_qkv_t, b_qkv, sparse_attn_t,
                           *, batch_tile=None):
    """feature_padded: (B, S, Hp) bf16; returns (B, S, Hp) f32 (padded cols = 0)."""
    B, S, Hp = feature_padded.shape
    assert S % 8 == 0, "two_pos must be a multiple of 8 (sublane) for the reshape"
    assert Hp % LANE == 0, "hidden dim must be padded to a multiple of 128 lanes"

    bt = _default_batch_tile(B, S, Hp) if batch_tile is None else min(batch_tile, B)
    assert B % bt == 0, "batch_tile must divide batch"
    grid_len = B // bt

    # Advisory cost hint for XLA's scheduler around the custom call.
    flops = (2 * B * S * Hp * 3 * Hp            # fused QKV projection
             + 2 * B * S * S * Hp               # Q K^T
             + 2 * B * S * S * S                # scores @ Sa^T
             + 2 * B * S * S * Hp)              # attn @ V
    cost = pl.CostEstimate(
        flops=int(flops),
        transcendentals=int(B * S * S + B * S),          # exp + reciprocal
        bytes_accessed=int(B * S * Hp * (2 + 4)          # bf16 in + f32 out
                           + Hp * 3 * Hp * 2 + 3 * Hp * 4 + S * S * 2))

    const2d = lambda b: (0, 0)
    return pl.pallas_call(
        _local_attention_kernel,
        out_shape=jax.ShapeDtypeStruct((B, S, Hp), jnp.float32),
        grid_spec=pltpu.PrefetchScalarGridSpec(
            num_scalar_prefetch=0,
            grid=(grid_len,),
            in_specs=[
                pl.BlockSpec((bt, S, Hp), lambda b: (b, 0, 0)),   # feature (bf16)
                pl.BlockSpec((Hp, 3 * Hp), const2d),              # [Wq|Wk|Wv]^T (bf16)
                pl.BlockSpec((1, 3 * Hp), const2d),               # [bq|bk|bv]   (f32)
                pl.BlockSpec((S, S), const2d),                    # sparse_attn^T (bf16)
            ],
            out_specs=pl.BlockSpec((bt, S, Hp), lambda b: (b, 0, 0)),
        ),
        compiler_params=pltpu.CompilerParams(
            # batch-tile axis: no-op on 1-TC chips, shards across v7x's 2 TCs.
            dimension_semantics=("parallel",),
            vmem_limit_bytes=48 * 1024 * 1024),
        cost_estimate=cost,
    )(feature_padded, w_qkv_t, b_qkv, sparse_attn_t)


def local_attention(feature, w_qkv_t, b_qkv, sparse_attn_t, hidden_dim,
                    *, batch_tile=None):
    """User-facing entry: f32 (B, S, H) feature in, f32 (B, S, H) out."""
    B, S, H = feature.shape
    Hp = w_qkv_t.shape[0]
    # bf16 + zero-pad the only per-step streamed tensor (padded cols are zero,
    # so padded q/k/v columns are exactly zero and the math is unchanged).
    feat_p = jnp.zeros((B, S, Hp), jnp.bfloat16).at[:, :, :H].set(
        feature.astype(jnp.bfloat16))
    out_p = local_attention_pallas(feat_p, w_qkv_t, b_qkv, sparse_attn_t,
                                   batch_tile=batch_tile)
    return out_p[:, :, :hidden_dim]


# ----------------------------------------------------------------------------
# Static (init-time) precomputation: windowed mask -> softmax -> topk scatter.
# ----------------------------------------------------------------------------
def build_sparse_attention(two_pos, window_size, sparsity):
    idx = jnp.arange(two_pos)
    # mask[i, j] = 1 iff |i - j| <= window_size (same as the Python loop)
    mask = (jnp.abs(idx[:, None] - idx[None, :]) <= window_size).astype(jnp.float32)
    weights = jax.nn.softmax(mask, axis=-1)                      # (S, S)
    num_nonzero = int(two_pos // sparsity) + 2 * window_size
    num_nonzero = min(num_nonzero, two_pos)
    # TODO(synk): lax.top_k tie-breaking among exactly-equal weights may pick
    # different indices than torch.topk (init-time only).
    vals, top_idx = jax.lax.top_k(weights, num_nonzero)
    sparse = jnp.zeros((two_pos, two_pos), jnp.float32)
    sparse = sparse.at[jnp.arange(two_pos)[:, None], top_idx].set(vals)
    return sparse


def init_linear(key, hidden_dim):
    # Deterministic synthetic init (PyTorch-Linear-like uniform bounds).
    kw, kb = jax.random.split(key)
    bound = 1.0 / math.sqrt(hidden_dim)
    w = jax.random.uniform(kw, (hidden_dim, hidden_dim), jnp.float32, -bound, bound)
    b = jax.random.uniform(kb, (1, hidden_dim), jnp.float32, -bound, bound)
    return w.T, b   # return W^T so the kernel computes x @ W^T + b


def pack_params(wq_t, bq, wk_t, bk, wv_t, bv, sparse_attn, hidden_dim):
    """Fuse QKV weights, fold 1/sqrt(d_k) into Q, zero-pad hidden dim to 128,
    pre-transpose sparse_attn."""
    scale = 1.0 / math.sqrt(hidden_dim)           # d_k = unpadded hidden_dim
    hp = ((hidden_dim + LANE - 1) // LANE) * LANE

    def pad_w(w):   # (H, H) -> (Hp, Hp), zero elsewhere
        return jnp.zeros((hp, hp), w.dtype).at[:hidden_dim, :hidden_dim].set(w)

    def pad_b(b):   # (1, H) -> (1, Hp), zero elsewhere (critical: keeps padded
        return jnp.zeros((1, hp), b.dtype).at[:, :hidden_dim].set(b)  # q/k/v = 0)

    w_qkv_t = jnp.concatenate(
        [pad_w(wq_t * scale), pad_w(wk_t), pad_w(wv_t)], axis=1).astype(jnp.bfloat16)
    b_qkv = jnp.concatenate([pad_b(bq * scale), pad_b(bk), pad_b(bv)], axis=1)  # f32
    sa_t = sparse_attn.T.astype(jnp.bfloat16)
    return w_qkv_t, b_qkv, sa_t


# ----------------------------------------------------------------------------
# Pure-JAX reference (mirrors the PyTorch forward) for a correctness check.
# ----------------------------------------------------------------------------
def local_attention_ref(feature, wq_t, bq, wk_t, bk, wv_t, bv, sparse_attn):
    d_k = feature.shape[-1]
    q = feature @ wq_t + bq
    k = feature @ wk_t + bk
    v = feature @ wv_t + bv
    o = jnp.einsum("st,bth->bsh", sparse_attn, k)
    o = jnp.einsum("bsh,bth->bst", q, o) / math.sqrt(d_k)
    o = jax.nn.softmax(o, axis=-1) @ v
    return o


if __name__ == "__main__":
    B, S, H = 2, 16, 32          # batch, two_pos (= seq), hidden_dim
    window_size, sparsity = 2, 2

    key = jax.random.PRNGKey(0)
    kx, kq, kk, kv = jax.random.split(key, 4)

    feature = jax.random.normal(kx, (B, S, H), jnp.float32)
    wq_t, bq = init_linear(kq, H)
    wk_t, bk = init_linear(kk, H)
    wv_t, bv = init_linear(kv, H)
    sparse_attn = build_sparse_attention(S, window_size, sparsity)

    w_qkv_t, b_qkv, sa_t = pack_params(wq_t, bq, wk_t, bk, wv_t, bv,
                                       sparse_attn, H)

    out = local_attention(feature, w_qkv_t, b_qkv, sa_t, H)
    out = jax.block_until_ready(out)

    ref = local_attention_ref(feature, wq_t, bq, wk_t, bk, wv_t, bv, sparse_attn)
    assert out.shape == (B, S, H)
    # bf16 MXU operands / bf16 feature I/O with f32 accumulation -> loose tol.
    err = float(jnp.max(jnp.abs(out - ref)))
    assert jnp.allclose(out, ref, atol=2e-2, rtol=2e-2), f"max abs err {err}"

    print("KERNEL_OK")
</pallas_src>

<mosaic_0001>
module attributes {stable_mosaic.version = 11 : i64} {
  func.func @_local_attention_kernel(%arg0: i32, %arg1: memref<1x16x128xbf16, #tpu.memory_space<vmem>>, %arg2: memref<128x384xbf16, #tpu.memory_space<vmem>>, %arg3: memref<1x384xf32, #tpu.memory_space<vmem>>, %arg4: memref<16x16xbf16, #tpu.memory_space<vmem>>, %arg5: memref<1x16x128xf32, #tpu.memory_space<vmem>>) attributes {dimension_semantics = [#tpu.dimension_semantics<parallel>], iteration_bounds = array<i64: 2>, scalar_prefetch = 0 : i64, scratch_operands = 0 : i64, tpu.core_type = #tpu.core_type<tc>, window_params = [{transform_indices = @transform_0, window_bounds = array<i64: 1, 16, 128>}, {pipeline_mode = #tpu.pipeline_mode<synchronous>, transform_indices = @transform_1, window_bounds = array<i64: 128, 384>}, {pipeline_mode = #tpu.pipeline_mode<synchronous>, transform_indices = @transform_2, window_bounds = array<i64: 1, 384>}, {pipeline_mode = #tpu.pipeline_mode<synchronous>, transform_indices = @transform_3, window_bounds = array<i64: 16, 16>}, {transform_indices = @transform_4, window_bounds = array<i64: 1, 16, 128>}]} {
    %c0 = arith.constant 0 : index
    %c0_0 = arith.constant 0 : index
    %c0_1 = arith.constant 0 : index
    %0 = vector.load %arg1[%c0, %c0_0, %c0_1] : memref<1x16x128xbf16, #tpu.memory_space<vmem>>, vector<1x16x128xbf16>
    %1 = vector.shape_cast %0 : vector<1x16x128xbf16> to vector<16x128xbf16>
    %c0_2 = arith.constant 0 : index
    %c0_3 = arith.constant 0 : index
    %2 = vector.load %arg2[%c0_2, %c0_3] : memref<128x384xbf16, #tpu.memory_space<vmem>>, vector<128x384xbf16>
    %cst = arith.constant dense<0.000000e+00> : vector<16x384xf32>
    %3 = tpu.matmul %1, %2, %cst {dimension_numbers = #tpu.dot_dimension_numbers<[1], [0], [0], [1], [0, 0, 1, 1], [], []>} : vector<16x128xbf16>, vector<128x384xbf16>, vector<16x384xf32> -> vector<16x384xf32>
    %c0_4 = arith.constant 0 : index
    %c0_5 = arith.constant 0 : index
    %4 = vector.load %arg3[%c0_4, %c0_5] : memref<1x384xf32, #tpu.memory_space<vmem>>, vector<1x384xf32>
    %5 = vector.broadcast %4 : vector<1x384xf32> to vector<16x384xf32>
    %6 = arith.addf %3, %5 : vector<16x384xf32>
    %7 = vector.extract_strided_slice %6 {offsets = [0, 0], sizes = [16, 128], strides = [1, 1]} : vector<16x384xf32> to vector<16x128xf32>
    %8 = vector.shape_cast %7 : vector<16x128xf32> to vector<1x16x128xf32>
    %9 = arith.truncf %8 : vector<1x16x128xf32> to vector<1x16x128xbf16>
    %10 = vector.extract_strided_slice %6 {offsets = [0, 128], sizes = [16, 128], strides = [1, 1]} : vector<16x384xf32> to vector<16x128xf32>
    %11 = vector.shape_cast %10 : vector<16x128xf32> to vector<1x16x128xf32>
    %12 = arith.truncf %11 : vector<1x16x128xf32> to vector<1x16x128xbf16>
    %13 = vector.extract_strided_slice %6 {offsets = [0, 256], sizes = [16, 128], strides = [1, 1]} : vector<16x384xf32> to vector<16x128xf32>
    %14 = vector.shape_cast %13 : vector<16x128xf32> to vector<1x16x128xf32>
    %15 = arith.truncf %14 : vector<1x16x128xf32> to vector<1x16x128xbf16>
    "tpu.trace_start"() <{level = 10 : i32, message = "bih,bjh->bij"}> : () -> ()
    %cst_6 = arith.constant dense<0.000000e+00> : vector<1x16x16xf32>
    %16 = tpu.matmul %9, %12, %cst_6 {dimension_numbers = #tpu.dot_dimension_numbers<[2], [2], [1], [1], [0, 0, 0, 1, 1, 1], [0], [0]>} : vector<1x16x128xbf16>, vector<1x16x128xbf16>, vector<1x16x16xf32> -> vector<1x16x16xf32>
    "tpu.trace_stop"() : () -> ()
    %17 = vector.shape_cast %16 : vector<1x16x16xf32> to vector<16x16xf32>
    %18 = arith.truncf %17 : vector<16x16xf32> to vector<16x16xbf16>
    %c0_7 = arith.constant 0 : index
    %c0_8 = arith.constant 0 : index
    %19 = vector.load %arg4[%c0_7, %c0_8] : memref<16x16xbf16, #tpu.memory_space<vmem>>, vector<16x16xbf16>
    %cst_9 = arith.constant dense<0.000000e+00> : vector<16x16xf32>
    %20 = tpu.matmul %18, %19, %cst_9 {dimension_numbers = #tpu.dot_dimension_numbers<[1], [0], [0], [1], [0, 0, 1, 1], [], []>} : vector<16x16xbf16>, vector<16x16xbf16>, vector<16x16xf32> -> vector<16x16xf32>
    %cst_10 = arith.constant dense<0xFF800000> : vector<16xf32>
    %21 = vector.multi_reduction <maximumf>, %20, %cst_10 [1] : vector<16x16xf32> to vector<16xf32>
    %22 = vector.shape_cast %21 : vector<16xf32> to vector<16x1xf32>
    %23 = vector.broadcast %22 : vector<16x1xf32> to vector<16x16xf32>
    %24 = arith.subf %20, %23 : vector<16x16xf32>
    %25 = math.exp %24 : vector<16x16xf32>
    %cst_11 = arith.constant dense<0.000000e+00> : vector<16xf32>
    %26 = vector.multi_reduction <add>, %25, %cst_11 [1] : vector<16x16xf32> to vector<16xf32>
    %27 = vector.shape_cast %26 : vector<16xf32> to vector<16x1xf32>
    %28 = vector.shape_cast %27 : vector<16x1xf32> to vector<1x16x1xf32>
    %29 = vector.shape_cast %25 : vector<16x16xf32> to vector<1x16x16xf32>
    %30 = arith.truncf %29 : vector<1x16x16xf32> to vector<1x16x16xbf16>
    "tpu.trace_start"() <{level = 10 : i32, message = "bij,bjh->bih"}> : () -> ()
    %cst_12 = arith.constant dense<0.000000e+00> : vector<1x16x128xf32>
    %31 = tpu.matmul %30, %15, %cst_12 {dimension_numbers = #tpu.dot_dimension_numbers<[2], [1], [1], [2], [0, 0, 0, 1, 1, 2], [0], [0]>} : vector<1x16x16xbf16>, vector<1x16x128xbf16>, vector<1x16x128xf32> -> vector<1x16x128xf32>
    "tpu.trace_stop"() : () -> ()
    %32 = tpu.reciprocal %28 {approx = true} : vector<1x16x1xf32> -> vector<1x16x1xf32>
    %33 = vector.broadcast %32 : vector<1x16x1xf32> to vector<1x16x128xf32>
    %34 = arith.mulf %31, %33 : vector<1x16x128xf32>
    %c0_13 = arith.constant 0 : index
    %c0_14 = arith.constant 0 : index
    %c0_15 = arith.constant 0 : index
    %35 = vector.load %arg5[%c0_13, %c0_14, %c0_15] : memref<1x16x128xf32, #tpu.memory_space<vmem>>, vector<1x16x128xf32>
    tpu.vector_store %arg5[%c0_13, %c0_14, %c0_15], %34 {strides = array<i32>} : memref<1x16x128xf32, #tpu.memory_space<vmem>>, vector<1x16x128xf32>,
    return
  }
  func.func @transform_0(%arg0: i32) -> (i32, i32, i32) {
    %c0_i32 = arith.constant 0 : i32
    %c0_i32_0 = arith.constant 0 : i32
    %c0_i32_1 = arith.constant 0 : i32
    return %arg0, %c0_i32, %c0_i32_0 : i32, i32, i32
  }
  func.func @transform_1(%arg0: i32) -> (i32, i32) {
    %c0_i32 = arith.constant 0 : i32
    %c0_i32_0 = arith.constant 0 : i32
    %c0_i32_1 = arith.constant 0 : i32
    return %c0_i32, %c0_i32_0 : i32, i32
  }
  func.func @transform_2(%arg0: i32) -> (i32, i32) {
    %c0_i32 = arith.constant 0 : i32
    %c0_i32_0 = arith.constant 0 : i32
    %c0_i32_1 = arith.constant 0 : i32
    return %c0_i32, %c0_i32_0 : i32, i32
  }
  func.func @transform_3(%arg0: i32) -> (i32, i32) {
    %c0_i32 = arith.constant 0 : i32
    %c0_i32_0 = arith.constant 0 : i32
    %c0_i32_1 = arith.constant 0 : i32
    return %c0_i32, %c0_i32_0 : i32, i32
  }
  func.func @transform_4(%arg0: i32) -> (i32, i32, i32) {
    %c0_i32 = arith.constant 0 : i32
    %c0_i32_0 = arith.constant 0 : i32
    %c0_i32_1 = arith.constant 0 : i32
    return %arg0, %c0_i32, %c0_i32_0 : i32, i32, i32
  }
}

</mosaic_0001>

<llo_original>
// kernel: tpu_custom_call.1
$region0: #{tpu_custom_call.1}
  #allocation0 [shape = 'u32[]', space=smem, size = 0x4, offset = 0x4, fixed_abs, tag = 'smem constant byte address 0x4 - core index']
  #allocation1 [shape = 'u32[72,128]{1,0:T(1,128)}', space=vmem, size = 0x9000, scoped, tag = 'internal scratch']
  %s0 = inlined_call_operand.hbm [shape: bf16[2,16,128], index: 0, kind: input, shape index: {}]
  %s1 = inlined_call_operand.hbm [shape: bf16[128,384], index: 1, kind: input, shape index: {}]
  %s2 = inlined_call_operand.hbm [shape: f32[1,384], index: 2, kind: input, shape index: {}]
  %s3 = inlined_call_operand.hbm [shape: bf16[16,16], index: 3, kind: input, shape index: {}]
  %s4 = inlined_call_operand.hbm [shape: f32[2,16,128], index: 4, kind: output, shape index: {}]
  %s5 = sld [smem:[#allocation0]]
  $region65: #{tpu_custom_call.1} parent=0
    _
  %s7 = ssub.s32 1, %s5
  %s8 = scalar_select 0, %s7, %s5
  $region1: #{tpu_custom_call.1} parent=0
    #allocation2 [shape = 'u8[8192]{0}', space=vmem, size = 0x2000, scoped, tag = 'input window, operand 0']
    #allocation3 [shape = 's32[2]{0}', space=sflag, size = 0x8, scoped, tag = 'scoped memory for tpu_custom_call.1']
    #allocation4 [shape = 's32[2]{0}', space=sflag, size = 0x8, scoped, tag = 'scoped memory for tpu_custom_call.1']
    #allocation5 [shape = 'u8[98304]{0}', space=vmem, size = 0x18000, scoped, tag = 'input window, operand 1, single buffered']
    #allocation6 [shape = 's32[1]{0}', space=sflag, size = 0x4, scoped, tag = 'scoped memory for tpu_custom_call.1']
    #allocation7 [shape = 'u8[1536]{0}', space=vmem, size = 0x800, scoped, tag = 'input window, operand 2, single buffered']
    #allocation8 [shape = 'u8[4096]{0}', space=vmem, size = 0x1000, scoped, tag = 'input window, operand 3, single buffered']
    #allocation9 [shape = 's32[1]{0}', space=sflag, size = 0x4, scoped, tag = 'scoped memory for tpu_custom_call.1']
    #allocation10 [shape = 'u8[16384]{0}', space=vmem, size = 0x4000, scoped, tag = 'output window, operand 0']
    %9 = vsyncpa [#allocation3], 0
    %s10 = scalar_lea.sflag [#allocation3], 1
    %11 = vsyncpa %s10, 0
    %12 = vsyncpa [#allocation6], 0
    %13 = vsyncpa [#allocation9], 0
    %14 = vsyncpa [#allocation4], 0
    %s15 = scalar_lea.sflag [#allocation4], 1
    %16 = vsyncpa %s15, 0
    loop: start=0, step=1, limit=4
    $region2: #{tpu_custom_call.1} parent=1 // loop_pre_header
      _
    $region3: #{tpu_custom_call.1} parent=1 // loop_header
      %s18 = sphi 0, %s22
      %p19 = scmp.ge.s32.totalorder %s18, 4
      %s28 = sphi 0, %s30
      %s31 = sphi 0, %s28
      %s32 = sphi 0, %s31
      %s48 = sphi 0, %s32
      %s52 = sphi 0, %s52
      %s54 = sphi 0, %s52
      %s55 = sphi 0, %s54
      %s69 = sphi 0, %s55
      %s73 = sphi 0, %s73
      %s75 = sphi 0, %s73
      %s76 = sphi 0, %s75
      %s90 = sphi 0, %s76
      %s94 = sphi 0, %s94
      %s96 = sphi 0, %s94
      %s97 = sphi 0, %s96
      %s111 = sphi 0, %s97
      %s117 = sphi 0, %s119
      %s120 = sphi 0, %s117
      %s121 = sphi 0, %s120
      %s137 = sphi 0, %s121
    $region4: #{tpu_custom_call.1} parent=1 // loop_header_branch
      %21 = sbr.rel (%p19) target = $region8
    $region5: #{tpu_custom_call.1} parent=1 // loop_body
      %s23 = ssub.s32 %s18, 1
      %s24 = ssub.s32 %s18, 2
      %s25 = sadd.s32 %s18, 1
      %s26 = ssub.s32 %s18, %s25
      %p27 = scmp.eq.s32.totalorder %s26, 0
      %s29 = sadd.s32 %s28, 1
      %s30 = scalar_select %p27, %s28, %s29
      %p33 = pneg %p27
      %p34 = scmp.eq.s32.totalorder %s18, 1
      %p35 = por %p33, %p34
      %p36 = scmp.ne.s32.totalorder %s28, %s31
      %p37 = scmp.eq.s32.totalorder %s18, 0
      %p38 = por %p36, %p37
      %p39 = scmp.ne.s32.totalorder %s28, %s31
      %p40 = scmp.eq.s32.totalorder %s23, 1
      %p41 = por %p39, %p40
      %p42 = scmp.ne.s32.totalorder %s31, %s32
      %p43 = scmp.eq.s32.totalorder %s23, 0
      %p44 = por %p42, %p43
      %p45 = scmp.ne.s32.totalorder %s31, %s32
      %p46 = scmp.eq.s32.totalorder %s24, 1
      %p47 = por %p45, %p46
      %p49 = scmp.ne.s32.totalorder %s32, %s48
      %p50 = scmp.eq.s32.totalorder %s24, 0
      %p51 = por %p49, %p50
      %s53 = sadd.s32 %s52, 1
      %p56 = scmp.eq.s32.totalorder %s18, 1
      %p57 = scmp.ne.s32.totalorder %s52, %s54
      %p58 = scmp.eq.s32.totalorder %s18, 0
      %p59 = por %p57, %p58
      %p60 = scmp.ne.s32.totalorder %s52, %s54
      %p61 = scmp.eq.s32.totalorder %s23, 1
      %p62 = por %p60, %p61
      %p63 = scmp.ne.s32.totalorder %s54, %s55
      %p64 = scmp.eq.s32.totalorder %s23, 0
      %p65 = por %p63, %p64
      %p66 = scmp.ne.s32.totalorder %s54, %s55
      %p67 = scmp.eq.s32.totalorder %s24, 1
      %p68 = por %p66, %p67
      %p70 = scmp.ne.s32.totalorder %s55, %s69
      %p71 = scmp.eq.s32.totalorder %s24, 0
      %p72 = por %p70, %p71
      %s74 = sadd.s32 %s73, 1
      %p77 = scmp.eq.s32.totalorder %s18, 1
      %p78 = scmp.ne.s32.totalorder %s73, %s75
      %p79 = scmp.eq.s32.totalorder %s18, 0
      %p80 = por %p78, %p79
      %p81 = scmp.ne.s32.totalorder %s73, %s75
      %p82 = scmp.eq.s32.totalorder %s23, 1
      %p83 = por %p81, %p82
      %p84 = scmp.ne.s32.totalorder %s75, %s76
      %p85 = scmp.eq.s32.totalorder %s23, 0
      %p86 = por %p84, %p85
      %p87 = scmp.ne.s32.totalorder %s75, %s76
      %p88 = scmp.eq.s32.totalorder %s24, 1
      %p89 = por %p87, %p88
      %p91 = scmp.ne.s32.totalorder %s76, %s90
      %p92 = scmp.eq.s32.totalorder %s24, 0
      %p93 = por %p91, %p92
      %s95 = sadd.s32 %s94, 1
      %p98 = scmp.eq.s32.totalorder %s18, 1
      %p99 = scmp.ne.s32.totalorder %s94, %s96
      %p100 = scmp.eq.s32.totalorder %s18, 0
      %p101 = por %p99, %p100
      %p102 = scmp.ne.s32.totalorder %s94, %s96
      %p103 = scmp.eq.s32.totalorder %s23, 1
      %p104 = por %p102, %p103
      %p105 = scmp.ne.s32.totalorder %s96, %s97
      %p106 = scmp.eq.s32.totalorder %s23, 0
      %p107 = por %p105, %p106
      %p108 = scmp.ne.s32.totalorder %s96, %s97
      %p109 = scmp.eq.s32.totalorder %s24, 1
      %p110 = por %p108, %p109
      %p112 = scmp.ne.s32.totalorder %s97, %s111
      %p113 = scmp.eq.s32.totalorder %s24, 0
      %p114 = por %p112, %p113
      %s115 = ssub.s32 %s18, %s25
      %p116 = scmp.eq.s32.totalorder %s115, 0
      %s118 = sadd.s32 %s117, 1
      %s119 = scalar_select %p116, %s117, %s118
      %p122 = pneg %p116
      %p123 = scmp.eq.s32.totalorder %s18, 1
      %p124 = por %p122, %p123
      %p125 = scmp.ne.s32.totalorder %s117, %s120
      %p126 = scmp.eq.s32.totalorder %s18, 0
      %p127 = por %p125, %p126
      %p128 = scmp.ne.s32.totalorder %s117, %s120
      %p129 = scmp.eq.s32.totalorder %s23, 1
      %p130 = por %p128, %p129
      %p131 = scmp.ne.s32.totalorder %s120, %s121
      %p132 = scmp.eq.s32.totalorder %s23, 0
      %p133 = por %p131, %p132
      %p134 = scmp.ne.s32.totalorder %s120, %s121
      %p135 = scmp.eq.s32.totalorder %s24, 1
      %p136 = por %p134, %p135
      %p138 = scmp.ne.s32.totalorder %s121, %s137
      %p139 = scmp.eq.s32.totalorder %s24, 0
      %p140 = por %p138, %p139
      %p141 = scmp.le.s32.totalorder 1, %s18
      %p142 = scmp.lt.s32.totalorder %s18, 3
      %p143 = pnand %p141, %p142
      %p144 = pneg %p143
      // Predicated region
      $region9: #{tpu_custom_call.1} parent=5 // pred_check
        _
      $region10: #{tpu_custom_call.1} parent=5 // pred_check_branch
        %146 = sbr.rel (%p143) target = $region12
      $region11: #{tpu_custom_call.1} parent=5 // pred_region
        %s147 = ssub.s32 %s18, 1
        // Predicated region
        $region13: #{tpu_custom_call.1} parent=11 // pred_check
          %p148 = pneg %p65
        $region14: #{tpu_custom_call.1} parent=11 // pred_check_branch
          %150 = sbr.rel (%p148) target = $region16
        $region15: #{tpu_custom_call.1} parent=11 // pred_region
          %152 = vsyncadd [#allocation6], 0
          %s153 = sshll.u32 %s1, 4
          %s154 = int_to_ptr.hbm [resolvable:$true] %s153
          %s155 = sshll.u32 [#allocation5], 4
          %s156 = int_to_ptr.vmem [resolvable:$true] %s155
          %161 = dma.hbm_to_vmem [thread:$0]  %s154, 3072, %s156, [#allocation6], 192, 192, 12
        $region16: #{tpu_custom_call.1} parent=11 // pred_fallthru
          _
        // Predicated region
        $region17: #{tpu_custom_call.1} parent=11 // pred_check
          %p162 = pneg %p86
        $region18: #{tpu_custom_call.1} parent=11 // pred_check_branch
          %164 = sbr.rel (%p162) target = $region20
        $region19: #{tpu_custom_call.1} parent=11 // pred_region
          %166 = vsyncadd [#allocation6], 0
          %s168 = sshll.u32 %s2, 4
          %s169 = int_to_ptr.hbm [resolvable:$true] %s168
          %s170 = sshll.u32 [#allocation7], 4
          %s171 = int_to_ptr.vmem [resolvable:$true] %s170
          %173 = dma.hbm_to_vmem [thread:$0]  %s169, 48, %s171, [#allocation6]
        $region20: #{tpu_custom_call.1} parent=11 // pred_fallthru
          _
        // Predicated region
        $region21: #{tpu_custom_call.1} parent=11 // pred_check
          %p174 = pneg %p107
        $region22: #{tpu_custom_call.1} parent=11 // pred_check_branch
          %176 = sbr.rel (%p174) target = $region24
        $region23: #{tpu_custom_call.1} parent=11 // pred_region
          %178 = vsyncadd [#allocation9], 0
          %s179 = sshll.u32 %s3, 4
          %s180 = int_to_ptr.hbm [resolvable:$true] %s179
          %s181 = sshll.u32 [#allocation8], 4
          %s182 = int_to_ptr.vmem [resolvable:$true] %s181
          %187 = dma.hbm_to_vmem [thread:$0]  %s180, 128, %s182, [#allocation9], 64, 64, 4
        $region24: #{tpu_custom_call.1} parent=11 // pred_fallthru
          _
      $region12: #{tpu_custom_call.1} parent=5 // pred_fallthru
        _
      %p188 = scmp.lt.s32.totalorder %s18, 2
      // Predicated region
      $region25: #{tpu_custom_call.1} parent=5 // pred_check
        %p189 = pneg %p188
      $region26: #{tpu_custom_call.1} parent=5 // pred_check_branch
        %191 = sbr.rel (%p189) target = $region28
      $region27: #{tpu_custom_call.1} parent=5 // pred_region
        // Predicated region
        $region29: #{tpu_custom_call.1} parent=27 // pred_check
          %p192 = pneg %p38
        $region30: #{tpu_custom_call.1} parent=27 // pred_check_branch
          %194 = sbr.rel (%p192) target = $region32
        $region31: #{tpu_custom_call.1} parent=27 // pred_region
          %s195 = sand.u32 %s28, 1
          %s196 = scalar_lea.sflag [#allocation3], %s195
          %s197 = sand.u32 %s28, 1
          %s198 = smul.addr %s197, 8
          %s199 = scalar_lea.vmem [#allocation2], %s198
          %201 = vsyncadd %s196, 0
          %s202 = smul.addr %s18, 2
          %s203 = smul.addr %s202, 4
          %s204 = scalar_lea.hbm %s0, %s203
          %s205 = sshll.u32 %s204, 4
          %s206 = int_to_ptr.hbm [resolvable:$true] %s205
          %s207 = sshll.u32 %s199, 4
          %s208 = int_to_ptr.vmem [resolvable:$true] %s207
          %213 = dma.hbm_to_vmem [thread:$0]  %s206, 128, %s208, %s196, 64, 64, 4
        $region32: #{tpu_custom_call.1} parent=27 // pred_fallthru
          _
      $region28: #{tpu_custom_call.1} parent=5 // pred_fallthru
        _
      %p214 = scmp.le.s32.totalorder 1, %s18
      %p215 = scmp.lt.s32.totalorder %s18, 3
      %p216 = pnand %p214, %p215
      %p217 = pneg %p216
      // Predicated region
      $region33: #{tpu_custom_call.1} parent=5 // pred_check
        _
      $region34: #{tpu_custom_call.1} parent=5 // pred_check_branch
        %219 = sbr.rel (%p216) target = $region36
      $region35: #{tpu_custom_call.1} parent=5 // pred_region
        %s220 = ssub.s32 %s18, 1
        %s221 = sand.u32 %s31, 1
        %s222 = scalar_lea.sflag [#allocation3], %s221
        %s223 = sand.u32 %s31, 1
        %s224 = smul.addr %s223, 8
        %s225 = scalar_lea.vmem [#allocation2], %s224
        // Predicated region
        $region37: #{tpu_custom_call.1} parent=35 // pred_check
          %p226 = pneg %p44
        $region38: #{tpu_custom_call.1} parent=35 // pred_check_branch
          %228 = sbr.rel (%p226) target = $region40
        $region39: #{tpu_custom_call.1} parent=35 // pred_region
          %230 = dma.done %s222, 128
        $region40: #{tpu_custom_call.1} parent=35 // pred_fallthru
          _
        // Predicated region
        $region41: #{tpu_custom_call.1} parent=35 // pred_check
          %p231 = pneg %p65
        $region42: #{tpu_custom_call.1} parent=35 // pred_check_branch
          %233 = sbr.rel (%p231) target = $region44
        $region43: #{tpu_custom_call.1} parent=35 // pred_region
          %235 = dma.done [#allocation6], 3072
        $region44: #{tpu_custom_call.1} parent=35 // pred_fallthru
          _
        // Predicated region
        $region45: #{tpu_custom_call.1} parent=35 // pred_check
          %p236 = pneg %p86
        $region46: #{tpu_custom_call.1} parent=35 // pred_check_branch
          %238 = sbr.rel (%p236) target = $region48
        $region47: #{tpu_custom_call.1} parent=35 // pred_region
          %240 = dma.done [#allocation6], 48
        $region48: #{tpu_custom_call.1} parent=35 // pred_fallthru
          _
        // Predicated region
        $region49: #{tpu_custom_call.1} parent=35 // pred_check
          %p241 = pneg %p107
        $region50: #{tpu_custom_call.1} parent=35 // pred_check_branch
          %243 = sbr.rel (%p241) target = $region52
        $region51: #{tpu_custom_call.1} parent=35 // pred_region
          %245 = dma.done [#allocation9], 128
        $region52: #{tpu_custom_call.1} parent=35 // pred_fallthru
          _
        %s246 = sand.u32 %s31, 1
        %s247 = scalar_lea.sflag [#allocation3], %s246
        %s248 = sand.u32 %s31, 1
        %s249 = smul.addr %s248, 8
        %s250 = scalar_lea.vmem [#allocation2], %s249
        %p251 = pneg %p44
        %p252 = pneg %p41
        %p253 = pneg %p65
        %p254 = pneg %p62
        %p255 = pneg %p86
        %p256 = pneg %p83
        %p257 = pneg %p107
        %p258 = pneg %p104
        %p259 = pneg %p133
        %p260 = pneg %p130
        %s261 = sand.u32 %s120, 1
        %s262 = scalar_lea.sflag [#allocation4], %s261
        %s263 = sand.u32 %s120, 1
        %s264 = smul.addr %s263, 16
        %s265 = scalar_lea.vmem [#allocation10], %s264
        %v267 = vld [vmem:[%s225] sm:$0xf]
        %v268 = vld [vmem:[%s225 + $0x4] sm:$0xf]
        %v269 = vld [vmem:[#allocation5] sm:$0xff]
        %v270 = vld [vmem:[#allocation5 + $0x8] sm:$0xf]
        %v271 = vld [vmem:[#allocation5 + $0xc] sm:$0xff]
        %v272 = vld [vmem:[#allocation5 + $0x14] sm:$0xf]
        %v273 = vld [vmem:[#allocation5 + $0x18] sm:$0xff]
        %v274 = vld [vmem:[#allocation5 + $0x20] sm:$0xf]
        %v275 = vld [vmem:[#allocation5 + $0x24] sm:$0xff]
        %v276 = vld [vmem:[#allocation5 + $0x2c] sm:$0xf]
        %v277 = vld [vmem:[#allocation5 + $0x30] sm:$0xff]
        %v278 = vld [vmem:[#allocation5 + $0x38] sm:$0xf]
        %v279 = vld [vmem:[#allocation5 + $0x3c] sm:$0xff]
        %v280 = vld [vmem:[#allocation5 + $0x44] sm:$0xf]
        %v281 = vld [vmem:[#allocation5 + $0x48] sm:$0xff]
        %v282 = vld [vmem:[#allocation5 + $0x50] sm:$0xf]
        %v283 = vld [vmem:[#allocation5 + $0x54] sm:$0xff]
        %v284 = vld [vmem:[#allocation5 + $0x5c] sm:$0xf]
        %v285 = vld [vmem:[#allocation5 + $0x60] sm:$0xff]
        %v286 = vld [vmem:[#allocation5 + $0x68] sm:$0xf]
        %v287 = vld [vmem:[#allocation5 + $0x6c] sm:$0xff]
        %v288 = vld [vmem:[#allocation5 + $0x74] sm:$0xf]
        %v289 = vld [vmem:[#allocation5 + $0x78] sm:$0xff]
        %v290 = vld [vmem:[#allocation5 + $0x80] sm:$0xf]
        %v291 = vld [vmem:[#allocation5 + $0x84] sm:$0xff]
        %v292 = vld [vmem:[#allocation5 + $0x8c] sm:$0xf]
        %v293 = vld [vmem:[#allocation5 + $0x90] sm:$0xff]
        %v294 = vld [vmem:[#allocation5 + $0x98] sm:$0xf]
        %v295 = vld [vmem:[#allocation5 + $0x9c] sm:$0xff]
        %v296 = vld [vmem:[#allocation5 + $0xa4] sm:$0xf]
        %v297 = vld [vmem:[#allocation5 + $0xa8] sm:$0xff]
        %v298 = vld [vmem:[#allocation5 + $0xb0] sm:$0xf]
        %v299 = vld [vmem:[#allocation5 + $0xb4] sm:$0xff]
        %v300 = vld [vmem:[#allocation5 + $0xbc] sm:$0xf]
        %v301 = vld [vmem:[#allocation7] sm:$0x7]
        %v303 = vperm.slane %v301, 0
        %v304 = vperm.slane %v301, 1
        %v305 = vperm.slane %v301, 2
        %v311 = vunpack.c.l.b16 %v267
        %v312 = vunpack.c.l.b16 %v268
        %v313 = vpack.c.b16 %v312, %v311
        %v347 = vunpack.c.l.b16 %v269
        %v348 = vunpack.c.h.b16 %v269
        %v349 = vunpack.c.l.b16 %v270
        %v350 = vunpack.c.l.b16 %v271
        %v351 = vunpack.c.h.b16 %v271
        %v352 = vunpack.c.l.b16 %v272
        %v353 = vunpack.c.l.b16 %v273
        %v354 = vunpack.c.h.b16 %v273
        %v355 = vunpack.c.l.b16 %v274
        %v356 = vunpack.c.l.b16 %v275
        %v357 = vunpack.c.h.b16 %v275
        %v358 = vunpack.c.l.b16 %v276
        %v359 = vunpack.c.l.b16 %v277
        %v360 = vunpack.c.h.b16 %v277
        %v361 = vunpack.c.l.b16 %v278
        %v362 = vunpack.c.l.b16 %v279
        %v363 = vunpack.c.h.b16 %v279
        %v364 = vunpack.c.l.b16 %v280
        %v365 = vunpack.c.l.b16 %v281
        %v366 = vunpack.c.h.b16 %v281
        %v367 = vunpack.c.l.b16 %v282
        %v368 = vunpack.c.l.b16 %v283
        %v369 = vunpack.c.h.b16 %v283
        %v370 = vunpack.c.l.b16 %v284
        %v371 = vunpack.c.l.b16 %v285
        %v372 = vunpack.c.h.b16 %v285
        %v373 = vunpack.c.l.b16 %v286
        %v374 = vunpack.c.l.b16 %v287
        %v375 = vunpack.c.h.b16 %v287
        %v376 = vunpack.c.l.b16 %v288
        %v377 = vunpack.c.l.b16 %v289
        %v378 = vunpack.c.h.b16 %v289
        %v379 = vunpack.c.l.b16 %v290
        %v380 = vunpack.c.l.b16 %v291
        %v381 = vunpack.c.h.b16 %v291
        %v382 = vunpack.c.l.b16 %v292
        %v383 = vunpack.c.l.b16 %v293
        %v384 = vunpack.c.h.b16 %v293
        %v385 = vunpack.c.l.b16 %v294
        %v386 = vunpack.c.l.b16 %v295
        %v387 = vunpack.c.h.b16 %v295
        %v388 = vunpack.c.l.b16 %v296
        %v389 = vunpack.c.l.b16 %v297
        %v390 = vunpack.c.h.b16 %v297
        %v391 = vunpack.c.l.b16 %v298
        %v392 = vunpack.c.l.b16 %v299
        %v393 = vunpack.c.h.b16 %v299
        %v394 = vunpack.c.l.b16 %v300
        %v395 = vpack.c.b16 %v350, %v347
        %v396 = vpack.c.b16 %v351, %v348
        %v397 = vpack.c.b16 %v352, %v349
        %v398 = vpack.c.b16 %v356, %v353
        %v399 = vpack.c.b16 %v357, %v354
        %v400 = vpack.c.b16 %v358, %v355
        %v401 = vpack.c.b16 %v362, %v359
        %v402 = vpack.c.b16 %v363, %v360
        %v403 = vpack.c.b16 %v364, %v361
        %v404 = vpack.c.b16 %v368, %v365
        %v405 = vpack.c.b16 %v369, %v366
        %v406 = vpack.c.b16 %v370, %v367
        %v407 = vpack.c.b16 %v374, %v371
        %v408 = vpack.c.b16 %v375, %v372
        %v409 = vpack.c.b16 %v376, %v373
        %v410 = vpack.c.b16 %v380, %v377
        %v411 = vpack.c.b16 %v381, %v378
        %v412 = vpack.c.b16 %v382, %v379
        %v413 = vpack.c.b16 %v386, %v383
        %v414 = vpack.c.b16 %v387, %v384
        %v415 = vpack.c.b16 %v388, %v385
        %v416 = vpack.c.b16 %v392, %v389
        %v417 = vpack.c.b16 %v393, %v390
        %v418 = vpack.c.b16 %v394, %v391
        %443 = vmatpush.bf16.msra.mxu0 %v416
        %444 = vmatpush.bf16.msra.mxu0 %v413
        %445 = vmatpush.bf16.msra.mxu0 %v410
        %446 = vmatpush.bf16.msra.mxu0 %v407
        %447 = vmatpush.bf16.msra.mxu0 %v404
        %448 = vmatpush.bf16.msra.mxu0 %v401
        %449 = vmatpush.bf16.msra.mxu0 %v398
        %450 = vmatpush.bf16.msra.mxu0 %v395
        %451 = vmatmul.bf16.gmra.mxu0 %v313
        %v452 = vpop.f32.mrf.mxu0
        %v453 = vadd.f32 %v303, %v452
        %v454 = vpop.f32.mrf.mxu0
        %v455 = vadd.f32 %v303, %v454
        %456 = vdwg.mxu0
        %457 = vmatpush.bf16.msra.mxu0 %v417
        %458 = vmatpush.bf16.msra.mxu0 %v414
        %459 = vmatpush.bf16.msra.mxu0 %v411
        %460 = vmatpush.bf16.msra.mxu0 %v408
        %461 = vmatpush.bf16.msra.mxu0 %v405
        %462 = vmatpush.bf16.msra.mxu0 %v402
        %463 = vmatpush.bf16.msra.mxu0 %v399
        %464 = vmatpush.bf16.msra.mxu0 %v396
        %465 = vmatmul.bf16.gmra.mxu0 %v313
        %v466 = vpop.f32.mrf.mxu0
        %v467 = vadd.f32 %v304, %v466
        %v468 = vpop.f32.mrf.mxu0
        %v469 = vadd.f32 %v304, %v468
        %470 = vdwg.mxu0
        %471 = vmatpush.bf16.msra.mxu0 %v418
        %472 = vmatpush.bf16.msra.mxu0 %v415
        %473 = vmatpush.bf16.msra.mxu0 %v412
        %474 = vmatpush.bf16.msra.mxu0 %v409
        %475 = vmatpush.bf16.msra.mxu0 %v406
        %476 = vmatpush.bf16.msra.mxu0 %v403
        %477 = vmatpush.bf16.msra.mxu0 %v400
        %478 = vmatpush.bf16.msra.mxu0 %v397
        %479 = vmatmul.bf16.gmra.mxu0 %v313
        %v480 = vpop.f32.mrf.mxu0
        %v481 = vadd.f32 %v305, %v480
        %v482 = vpop.f32.mrf.mxu0
        %v483 = vadd.f32 %v305, %v482
        %484 = vdwg.mxu0
        %v485 = vpack.c.bf16 %v453, %v453
        %v486 = vpack.c.bf16 %v455, %v455
        %v487 = vpack.c.bf16 %v467, %v467
        %v488 = vpack.c.bf16 %v469, %v469
        %v489 = vpack.c.bf16 %v481, %v481
        %v490 = vpack.c.bf16 %v483, %v483
        %v493 = vunpack.c.l.b16 %v485
        %v494 = vunpack.c.l.b16 %v486
        %v495 = vpack.c.b16 %v494, %v493
        %v499 = vunpack.c.l.b16 %v487
        %v500 = vunpack.c.l.b16 %v488
        %v501 = vpack.c.b16 %v500, %v499
        %503 = vmatpush.bf16.xpose.msra.mxu0 0
        %504 = vmatpush.bf16.xpose.msra.mxu0 0
        %505 = vmatpush.bf16.xpose.msra.mxu0 0
        %506 = vmatpush.bf16.xpose.msra.mxu0 0
        %507 = vmatpush.bf16.xpose.msra.mxu0 0
        %508 = vmatpush.bf16.xpose.msra.mxu0 0
        %509 = vmatpush.bf16.xpose.msra.mxu0 0
        %510 = vmatpush.bf16.xpose.msra.mxu0 %v501
        %511 = vmatmul.bf16.gmra.mxu0 %v495
        %v512 = vpop.f32.mrf.mxu0
        %v513 = vadd.f32 0.0, %v512
        %v514 = vpop.f32.mrf.mxu0
        %v515 = vadd.f32 0.0, %v514
        %516 = vdwg.mxu0
        %v517 = vpack.c.bf16 %v515, %v513
        %v518 = vld [vmem:[#allocation8] sm:$0xf]
        %v519 = vld [vmem:[#allocation8 + $0x4] sm:$0xf]
        %v522 = vunpack.c.l.b16 %v518
        %v523 = vunpack.c.l.b16 %v519
        %v524 = vpack.c.b16 %v523, %v522
        %vm526 = vcmask 130048
        %v528 = vsel %vm526, %v517, 0
        %530 = vmatpush.bf16.msra.mxu0 0
        %531 = vmatpush.bf16.msra.mxu0 0
        %532 = vmatpush.bf16.msra.mxu0 0
        %533 = vmatpush.bf16.msra.mxu0 0
        %534 = vmatpush.bf16.msra.mxu0 0
        %535 = vmatpush.bf16.msra.mxu0 0
        %536 = vmatpush.bf16.msra.mxu0 0
        %537 = vmatpush.bf16.msra.mxu0 %v524
        %538 = vmatmul.bf16.gmra.mxu0 %v528
        %v539 = vpop.f32.mrf.mxu0
        %v540 = vadd.f32 0.0, %v539
        %v541 = vpop.f32.mrf.mxu0
        %v542 = vadd.f32 0.0, %v541
        %543 = vdwg.mxu0
        %v544 = vsel %vm526, %v540, -inf
        %545 = vmax.xlane.f32.xlu0 %v544
        %v546 = vpop.xlane.xlu0 %545
        %v547 = vsel %vm526, %v542, -inf
        %548 = vmax.xlane.f32.xlu0 %v547
        %v549 = vpop.xlane.xlu0 %548
        %v550 = vsub.f32 %v540, %v546
        %v551 = vsub.f32 %v542, %v549
        %v552 = vmul.f32 %v550, 1.442695
        %v553 = vpow.pop %v552
        %v554 = vmul.f32 %v551, 1.442695
        %v555 = vpow.pop %v554
        %v556 = vsel %vm526, %v553, 0.0
        %557 = vadd.xlane.f32.xlu0 %v556
        %v558 = vpop.xlane.xlu0 %557
        %v559 = vsel %vm526, %v555, 0.0
        %560 = vadd.xlane.f32.xlu0 %v559
        %v561 = vpop.xlane.xlu0 %560
        %v562 = vpack.c.bf16 %v553, %v553
        %v563 = vpack.c.bf16 %v555, %v555
        %v566 = vunpack.c.l.b16 %v562
        %v567 = vunpack.c.l.b16 %v563
        %v568 = vpack.c.b16 %v567, %v566
        %v571 = vunpack.c.l.b16 %v489
        %v572 = vunpack.c.l.b16 %v490
        %v573 = vpack.c.b16 %v572, %v571
        %v576 = vsel %vm526, %v568, 0
        %578 = vmatpush.bf16.msra.mxu0 0
        %579 = vmatpush.bf16.msra.mxu0 0
        %580 = vmatpush.bf16.msra.mxu0 0
        %581 = vmatpush.bf16.msra.mxu0 0
        %582 = vmatpush.bf16.msra.mxu0 0
        %583 = vmatpush.bf16.msra.mxu0 0
        %584 = vmatpush.bf16.msra.mxu0 0
        %585 = vmatpush.bf16.msra.mxu0 %v573
        %586 = vmatmul.bf16.gmra.mxu0 %v576
        %v587 = vpop.f32.mrf.mxu0
        %v588 = vadd.f32 0.0, %v587
        %v589 = vpop.f32.mrf.mxu0
        %v590 = vadd.f32 0.0, %v589
        %591 = vdwg.mxu0
        %v592 = vrcp.pop %v558
        %v593 = vrcp.pop %v561
        %v594 = vmul.f32 %v588, %v592
        %v595 = vmul.f32 %v590, %v593
        %596 = vst [vmem:[%s265] sm:$0xff] %v594
        %597 = vst [vmem:[%s265 + $0x8] sm:$0xff] %v595
        %s598 = sand.u32 %s120, 1
        %s599 = scalar_lea.sflag [#allocation4], %s598
        %s600 = sand.u32 %s120, 1
        %s601 = smul.addr %s600, 16
        %s602 = scalar_lea.vmem [#allocation10], %s601
        // Predicated region
        $region53: #{tpu_custom_call.1} parent=35 // pred_check
          %p603 = pneg %p130
        $region54: #{tpu_custom_call.1} parent=35 // pred_check_branch
          %605 = sbr.rel (%p603) target = $region56
        $region55: #{tpu_custom_call.1} parent=35 // pred_region
          %607 = vsyncadd %s599, 0
          %s608 = smul.addr %s23, 2
          %s609 = smul.addr %s608, 8
          %s610 = scalar_lea.hbm %s4, %s609
          %s611 = sshll.u32 %s602, 4
          %s612 = int_to_ptr.vmem [resolvable:$true] %s611
          %s613 = sshll.u32 %s610, 4
          %s614 = int_to_ptr.hbm [resolvable:$true] %s613
          %619 = dma.vmem_to_hbm [thread:$0]  %s612, 256, %s614, %s599, 128, 128, 8
        $region56: #{tpu_custom_call.1} parent=35 // pred_fallthru
          _
      $region36: #{tpu_custom_call.1} parent=5 // pred_fallthru
        _
      %p620 = scmp.le.s32.totalorder 2, %s18
      // Predicated region
      $region57: #{tpu_custom_call.1} parent=5 // pred_check
        %p621 = pneg %p620
      $region58: #{tpu_custom_call.1} parent=5 // pred_check_branch
        %623 = sbr.rel (%p621) target = $region60
      $region59: #{tpu_custom_call.1} parent=5 // pred_region
        %s624 = ssub.s32 %s18, 2
        // Predicated region
        $region61: #{tpu_custom_call.1} parent=59 // pred_check
          %p625 = pneg %p136
        $region62: #{tpu_custom_call.1} parent=59 // pred_check_branch
          %627 = sbr.rel (%p625) target = $region64
        $region63: #{tpu_custom_call.1} parent=59 // pred_region
          %s628 = sand.u32 %s121, 1
          %s629 = scalar_lea.sflag [#allocation4], %s628
          %s630 = sand.u32 %s121, 1
          %s631 = smul.addr %s630, 16
          %s632 = scalar_lea.vmem [#allocation10], %s631
          %634 = dma.done %s629, 256
        $region64: #{tpu_custom_call.1} parent=59 // pred_fallthru
          _
      $region60: #{tpu_custom_call.1} parent=5 // pred_fallthru
        _
    $region6: #{tpu_custom_call.1} parent=1 // loop_footer
      %s22 = sadd.s32 1, %s18
    $region7: #{tpu_custom_call.1} parent=1 // loop_footer_branch
      %17 = sbr.rel target = $region3
    $region8: #{tpu_custom_call.1} parent=1 // loop_exit
      _
    %635 = vsyncpa [#allocation3], 1
    %s636 = scalar_lea.sflag [#allocation3], 1
    %637 = vsyncpa %s636, 1
    %638 = vsyncpa [#allocation6], 1
    %639 = vsyncpa [#allocation9], 1
    %640 = vsyncpa [#allocation4], 1
    %s641 = scalar_lea.sflag [#allocation4], 1
    %642 = vsyncpa %s641, 1

</llo_original>
